<compile_context>
chip_gen: v7x
topology: tpu7x:2x2x1
jax: 0.10.0
libtpu: 0.0.40
codegen_flags: <defaults>
</compile_context>

<pallas_src>
import numpy as np
import jax
import jax.numpy as jnp
from jax.experimental import pallas as pl
from jax.experimental.pallas import tpu as pltpu


KERNEL_SIZE = 61   # module default
INTENSITY = 3.0    # module default (gaussian std)


# ----------------------------------------------------------------------------
# Deterministic weight construction (host-side numpy, matches scipy/torch).
# ----------------------------------------------------------------------------

def _gaussian_1d(std: float) -> np.ndarray:
    """Truncated/normalized 1-D gaussian used by scipy.ndimage.gaussian_filter
    (truncate=4.0).  Length 2*radius+1, radius = int(4*std + 0.5)."""
    radius = int(4.0 * std + 0.5)
    x = np.arange(-radius, radius + 1, dtype=np.float64)
    w = np.exp(-0.5 * (x / std) ** 2)
    w /= w.sum()
    return w


def _gaussian_blur_kernel_2d(kernel_size: int, std: float) -> np.ndarray:
    """Blurkernel.get_kernel(): gaussian_filter(delta, sigma=std) on a KxK grid.
    Outer product of the 1-D gaussian at the center, exactly zero elsewhere."""
    w1d = _gaussian_1d(std)
    radius = (len(w1d) - 1) // 2
    assert radius <= kernel_size // 2, (
        "gaussian radius exceeds kernel half-size; weights would be clipped")
    k2d = np.zeros((kernel_size, kernel_size), dtype=np.float64)
    c = kernel_size // 2
    k2d[c - radius:c + radius + 1, c - radius:c + radius + 1] = np.outer(w1d, w1d)
    return k2d.astype(np.float32)


def _reflect_index(i: int, n: int) -> int:
    # torch ReflectionPad2d / np.pad(mode="reflect") index mapping.
    if i < 0:
        return -i
    if i >= n:
        return 2 * (n - 1) - i
    return i


def _band_matrix(n: int, w1d: np.ndarray) -> np.ndarray:
    """A (n x n) such that (A @ v)[i] = sum_d w1d[d+r] * v[reflect(i+d, n)],
    i.e. the 1-D gaussian blur with reflection padding folded in."""
    r = (len(w1d) - 1) // 2
    assert n > r, "reflection padding requires spatial size > gaussian radius"
    A = np.zeros((n, n), dtype=np.float64)
    for i in range(n):
        for d in range(-r, r + 1):
            A[i, _reflect_index(i + d, n)] += w1d[d + r]
    return A.astype(np.float32)


# ----------------------------------------------------------------------------
# Pallas kernel.
# ----------------------------------------------------------------------------

def _blur_kernel(av_ref, aht_ref, x_ref, o_ref):
    # av_ref : (H, H)   bf16 column-blur band matrix (reflection folded in), resident
    # aht_ref: (W, W)   bf16 row-blur band matrix (already transposed), resident
    # x_ref  : (Bp, H, W) input planes for this grid step
    # o_ref  : (Bp, H, W)
    bp, h, w = x_ref.shape

    # Row pass for all planes at once: (Bp*H, W) @ (W, W).  Merging (Bp, H) is a
    # pure reshape of adjacent axes (H is a multiple of 8 here -> layout no-op).
    x2 = x_ref[...].reshape(bp * h, w).astype(jnp.bfloat16)
    r2 = jnp.dot(x2, aht_ref[...], preferred_element_type=jnp.float32)
    r2 = r2.astype(jnp.bfloat16)

    # Column pass per plane (bp is a small static int -> unrolled), no transposes.
    av = av_ref[...]
    for p in range(bp):
        o = jnp.dot(av, r2[p * h:(p + 1) * h, :], preferred_element_type=jnp.float32)
        o_ref[p] = o.astype(o_ref.dtype)


def _round_up(x: int, m: int) -> int:
    return ((x + m - 1) // m) * m


def _pick_grid(num_planes: int, plane_vmem_bytes: int, budget: int = 6 << 20) -> int:
    """Fewest grid steps (low per-step overhead), but an even count when possible
    so v7x's two TensorCores both get work, while keeping each (Bp,H,W) block
    (double-buffered in + out) under a VMEM budget."""
    for g in [d for d in range(1, num_planes + 1) if num_planes % d == 0]:
        if (num_planes // g) * plane_vmem_bytes <= budget:
            if g == 1 and num_planes % 2 == 0 and num_planes >= 2:
                return 2  # even split across v7x's 2 TCs; costs one extra step on v5e/v6e
            return g
    return num_planes


@jax.jit
def _gaussian_blur_nchw(x, av_bf16, aht_bf16):
    """Depthwise gaussian blur with reflection padding, NCHW in / NCHW out."""
    N, C, H, W = x.shape
    P = N * C
    planes = x.reshape(P, H, W)          # free collapse, no transpose

    plane_vmem = _round_up(H, 8) * _round_up(W, 128) * planes.dtype.itemsize
    G = _pick_grid(P, plane_vmem)
    Bp = P // G

    out = pl.pallas_call(
        _blur_kernel,
        out_shape=jax.ShapeDtypeStruct((P, H, W), x.dtype),
        grid=(G,),
        in_specs=[
            # Band matrices: tiny, constant block index -> stay resident in VMEM.
            pl.BlockSpec((H, H), lambda g: (0, 0)),
            pl.BlockSpec((W, W), lambda g: (0, 0)),
            # One group of Bp planes per grid step (block covers full H, W).
            pl.BlockSpec((Bp, H, W), lambda g: (g, 0, 0)),
        ],
        out_specs=pl.BlockSpec((Bp, H, W), lambda g: (g, 0, 0)),
        compiler_params=pltpu.CompilerParams(
            dimension_semantics=("parallel",)),
    )(av_bf16, aht_bf16, planes)

    return out.reshape(N, C, H, W)


# ----------------------------------------------------------------------------
# Operator wrapper (mirror of the PyTorch GaussialBlurOperator).
# ----------------------------------------------------------------------------

class GaussianBlurOperator:
    """JAX mirror of the PyTorch GaussialBlurOperator (deterministic weights)."""

    def __init__(self, kernel_size: int = KERNEL_SIZE, intensity: float = INTENSITY):
        self.kernel_size = kernel_size
        self.intensity = intensity
        self._w1d = _gaussian_1d(intensity)
        self.kernel = jnp.asarray(_gaussian_blur_kernel_2d(kernel_size, intensity))
        self._band_cache = {}

    def get_kernel(self):
        return self.kernel.reshape(1, 1, self.kernel_size, self.kernel_size)

    def _band_matrices(self, H: int, W: int):
        key = (H, W)
        if key not in self._band_cache:
            av = _band_matrix(H, self._w1d)
            aht = _band_matrix(W, self._w1d).T
            # bf16 operands: MXU-native on v5e/v6e/v7x, halves band DMA bytes.
            # f32 accumulation is kept inside the kernel.
            self._band_cache[key] = (jnp.asarray(av, dtype=jnp.bfloat16),
                                     jnp.asarray(aht, dtype=jnp.bfloat16))
        return self._band_cache[key]

    def forward(self, data):
        N, C, H, W = data.shape
        av, aht = self._band_matrices(H, W)
        return _gaussian_blur_nchw(data, av, aht)

    __call__ = forward

    def y_channel(self):
        return 3

    def transpose(self, data):
        return data

    # TODO(synk): to_pil (PIL image conversion) has no Pallas/JAX equivalent; omitted.


# ----------------------------------------------------------------------------
# Demo + correctness check.
# ----------------------------------------------------------------------------

if __name__ == "__main__":
    # Blurkernel's conv is Conv2d(3, 3, K, groups=3) -> channels must be 3.
    # torch ReflectionPad2d(K//2 = 30) requires spatial > 30, so use 64x64.
    N, C, H, W = 2, 3, 64, 64
    key = jax.random.PRNGKey(0)
    x = jax.random.normal(key, (N, C, H, W), dtype=jnp.float32)

    op = GaussianBlurOperator(kernel_size=KERNEL_SIZE, intensity=INTENSITY)
    y = jax.block_until_ready(op(x))
    assert y.shape == (N, C, H, W) and y.dtype == jnp.float32

    # Independent float64 numpy reference reproducing the PyTorch module:
    # ReflectionPad2d(K//2) followed by dense depthwise conv with the 61x61
    # gaussian weights.  Only the nonzero taps are iterated (skipped taps are
    # exactly 0.0, so the result is identical to the full 61x61 sum).
    k2d = np.asarray(op.kernel, dtype=np.float64)
    pad = KERNEL_SIZE // 2
    xp = np.pad(np.asarray(x, np.float64),
                ((0, 0), (0, 0), (pad, pad), (pad, pad)), mode="reflect")
    y_ref = np.zeros((N, C, H, W), np.float64)
    nz_i, nz_j = np.nonzero(k2d)
    for i, j in zip(nz_i, nz_j):
        y_ref += k2d[i, j] * xp[:, :, i:i + H, j:j + W]

    np.testing.assert_allclose(np.asarray(y, np.float64), y_ref, rtol=5e-3, atol=5e-3)

    print("KERNEL_OK")
</pallas_src>

<mosaic_0001>
module attributes {stable_mosaic.version = 11 : i64} {
  func.func @_blur_kernel(%arg0: i32, %arg1: memref<64x64xbf16, #tpu.memory_space<vmem>>, %arg2: memref<64x64xbf16, #tpu.memory_space<vmem>>, %arg3: memref<3x64x64xf32, #tpu.memory_space<vmem>>, %arg4: memref<3x64x64xf32, #tpu.memory_space<vmem>>) attributes {dimension_semantics = [#tpu.dimension_semantics<parallel>], iteration_bounds = array<i64: 2>, scalar_prefetch = 0 : i64, scratch_operands = 0 : i64, tpu.core_type = #tpu.core_type<tc>, window_params = [{pipeline_mode = #tpu.pipeline_mode<synchronous>, transform_indices = @transform_0, window_bounds = array<i64: 64, 64>}, {pipeline_mode = #tpu.pipeline_mode<synchronous>, transform_indices = @transform_1, window_bounds = array<i64: 64, 64>}, {transform_indices = @transform_2, window_bounds = array<i64: 3, 64, 64>}, {transform_indices = @transform_3, window_bounds = array<i64: 3, 64, 64>}]} {
    %c0 = arith.constant 0 : index
    %c0_0 = arith.constant 0 : index
    %c0_1 = arith.constant 0 : index
    %0 = vector.load %arg3[%c0, %c0_0, %c0_1] : memref<3x64x64xf32, #tpu.memory_space<vmem>>, vector<3x64x64xf32>
    %1 = vector.shape_cast %0 : vector<3x64x64xf32> to vector<192x64xf32>
    %2 = arith.truncf %1 : vector<192x64xf32> to vector<192x64xbf16>
    %c0_2 = arith.constant 0 : index
    %c0_3 = arith.constant 0 : index
    %3 = vector.load %arg2[%c0_2, %c0_3] : memref<64x64xbf16, #tpu.memory_space<vmem>>, vector<64x64xbf16>
    %cst = arith.constant dense<0.000000e+00> : vector<192x64xf32>
    %4 = tpu.matmul %2, %3, %cst {dimension_numbers = #tpu.dot_dimension_numbers<[1], [0], [0], [1], [0, 0, 1, 1], [], []>} : vector<192x64xbf16>, vector<64x64xbf16>, vector<192x64xf32> -> vector<192x64xf32>
    %5 = arith.truncf %4 : vector<192x64xf32> to vector<192x64xbf16>
    %c0_4 = arith.constant 0 : index
    %c0_5 = arith.constant 0 : index
    %6 = vector.load %arg1[%c0_4, %c0_5] : memref<64x64xbf16, #tpu.memory_space<vmem>>, vector<64x64xbf16>
    %7 = vector.extract_strided_slice %5 {offsets = [0, 0], sizes = [64, 64], strides = [1, 1]} : vector<192x64xbf16> to vector<64x64xbf16>
    %cst_6 = arith.constant dense<0.000000e+00> : vector<64x64xf32>
    %8 = tpu.matmul %6, %7, %cst_6 {dimension_numbers = #tpu.dot_dimension_numbers<[1], [0], [0], [1], [0, 0, 1, 1], [], []>} : vector<64x64xbf16>, vector<64x64xbf16>, vector<64x64xf32> -> vector<64x64xf32>
    %c0_7 = arith.constant 0 : index
    %c0_8 = arith.constant 0 : index
    %c0_9 = arith.constant 0 : index
    %9 = vector.load %arg4[%c0_7, %c0_8, %c0_9] : memref<3x64x64xf32, #tpu.memory_space<vmem>>, vector<1x64x64xf32>
    %10 = vector.shape_cast %9 : vector<1x64x64xf32> to vector<64x64xf32>
    %11 = vector.shape_cast %8 : vector<64x64xf32> to vector<1x64x64xf32>
    tpu.vector_store %arg4[%c0_7, %c0_8, %c0_9], %11 {strides = array<i32>} : memref<3x64x64xf32, #tpu.memory_space<vmem>>, vector<1x64x64xf32>,
    %12 = vector.extract_strided_slice %5 {offsets = [64, 0], sizes = [64, 64], strides = [1, 1]} : vector<192x64xbf16> to vector<64x64xbf16>
    %cst_10 = arith.constant dense<0.000000e+00> : vector<64x64xf32>
    %13 = tpu.matmul %6, %12, %cst_10 {dimension_numbers = #tpu.dot_dimension_numbers<[1], [0], [0], [1], [0, 0, 1, 1], [], []>} : vector<64x64xbf16>, vector<64x64xbf16>, vector<64x64xf32> -> vector<64x64xf32>
    %c1 = arith.constant 1 : index
    %c0_11 = arith.constant 0 : index
    %c0_12 = arith.constant 0 : index
    %14 = vector.load %arg4[%c1, %c0_11, %c0_12] : memref<3x64x64xf32, #tpu.memory_space<vmem>>, vector<1x64x64xf32>
    %15 = vector.shape_cast %14 : vector<1x64x64xf32> to vector<64x64xf32>
    %16 = vector.shape_cast %13 : vector<64x64xf32> to vector<1x64x64xf32>
    tpu.vector_store %arg4[%c1, %c0_11, %c0_12], %16 {strides = array<i32>} : memref<3x64x64xf32, #tpu.memory_space<vmem>>, vector<1x64x64xf32>,
    %17 = vector.extract_strided_slice %5 {offsets = [128, 0], sizes = [64, 64], strides = [1, 1]} : vector<192x64xbf16> to vector<64x64xbf16>
    %cst_13 = arith.constant dense<0.000000e+00> : vector<64x64xf32>
    %18 = tpu.matmul %6, %17, %cst_13 {dimension_numbers = #tpu.dot_dimension_numbers<[1], [0], [0], [1], [0, 0, 1, 1], [], []>} : vector<64x64xbf16>, vector<64x64xbf16>, vector<64x64xf32> -> vector<64x64xf32>
    %c2 = arith.constant 2 : index
    %c0_14 = arith.constant 0 : index
    %c0_15 = arith.constant 0 : index
    %19 = vector.load %arg4[%c2, %c0_14, %c0_15] : memref<3x64x64xf32, #tpu.memory_space<vmem>>, vector<1x64x64xf32>
    %20 = vector.shape_cast %19 : vector<1x64x64xf32> to vector<64x64xf32>
    %21 = vector.shape_cast %18 : vector<64x64xf32> to vector<1x64x64xf32>
    tpu.vector_store %arg4[%c2, %c0_14, %c0_15], %21 {strides = array<i32>} : memref<3x64x64xf32, #tpu.memory_space<vmem>>, vector<1x64x64xf32>,
    return
  }
  func.func @transform_0(%arg0: i32) -> (i32, i32) {
    %c0_i32 = arith.constant 0 : i32
    %c0_i32_0 = arith.constant 0 : i32
    %c0_i32_1 = arith.constant 0 : i32
    return %c0_i32, %c0_i32_0 : i32, i32
  }
  func.func @transform_1(%arg0: i32) -> (i32, i32) {
    %c0_i32 = arith.constant 0 : i32
    %c0_i32_0 = arith.constant 0 : i32
    %c0_i32_1 = arith.constant 0 : i32
    return %c0_i32, %c0_i32_0 : i32, i32
  }
  func.func @transform_2(%arg0: i32) -> (i32, i32, i32) {
    %c0_i32 = arith.constant 0 : i32
    %c0_i32_0 = arith.constant 0 : i32
    %c0_i32_1 = arith.constant 0 : i32
    return %arg0, %c0_i32, %c0_i32_0 : i32, i32, i32
  }
  func.func @transform_3(%arg0: i32) -> (i32, i32, i32) {
    %c0_i32 = arith.constant 0 : i32
    %c0_i32_0 = arith.constant 0 : i32
    %c0_i32_1 = arith.constant 0 : i32
    return %arg0, %c0_i32, %c0_i32_0 : i32, i32, i32
  }
}

</mosaic_0001>

<llo_original>
// kernel: _gaussian_blur_nchw.1
$region0: #{_gaussian_blur_nchw.1}
  #allocation0 [shape = 'u32[]', space=smem, size = 0x4, offset = 0x4, fixed_abs, tag = 'smem constant byte address 0x4 - core index']
  #allocation1 [shape = 'u32[144,128]{1,0:T(1,128)}', space=vmem, size = 0x12000, scoped, tag = 'internal scratch']
  %s0 = inlined_call_operand.hbm [shape: bf16[64,64], index: 0, kind: input, shape index: {}]
  %s1 = inlined_call_operand.hbm [shape: bf16[64,64], index: 1, kind: input, shape index: {}]
  %s2 = inlined_call_operand.hbm [shape: f32[6,64,64], index: 2, kind: input, shape index: {}]
  %s3 = inlined_call_operand.hbm [shape: f32[6,64,64], index: 3, kind: output, shape index: {}]
  %s4 = sld [smem:[#allocation0]]
  $region57: #{_gaussian_blur_nchw.1} parent=0
    _
  %s6 = ssub.s32 1, %s4
  %s7 = scalar_select 0, %s6, %s4
  $region1: #{_gaussian_blur_nchw.1} parent=0
    #allocation2 [shape = 'u8[16384]{0}', space=vmem, size = 0x4000, scoped, tag = 'input window, operand 0, single buffered']
    #allocation3 [shape = 's32[2]{0}', space=sflag, size = 0x8, scoped, tag = 'scoped memory for _gaussian_blur_nchw.1']
    #allocation4 [shape = 's32[2]{0}', space=sflag, size = 0x8, scoped, tag = 'scoped memory for _gaussian_blur_nchw.1']
    #allocation5 [shape = 'u8[16384]{0}', space=vmem, size = 0x4000, scoped, tag = 'input window, operand 1, single buffered']
    #allocation6 [shape = 's32[1]{0}', space=sflag, size = 0x4, scoped, tag = 'scoped memory for _gaussian_blur_nchw.1']
    #allocation7 [shape = 'u8[196608]{0}', space=vmem, size = 0x30000, scoped, tag = 'input window, operand 2']
    #allocation8 [shape = 'u8[196608]{0}', space=vmem, size = 0x30000, scoped, tag = 'output window, operand 0']
    %8 = vsyncpa [#allocation3], 0
    %9 = vsyncpa [#allocation6], 0
    %10 = vsyncpa [#allocation4], 0
    %s11 = scalar_lea.sflag [#allocation4], 1
    %12 = vsyncpa %s11, 0
    loop: start=0, step=1, limit=4
    $region2: #{_gaussian_blur_nchw.1} parent=1 // loop_pre_header
      _
    $region3: #{_gaussian_blur_nchw.1} parent=1 // loop_header
      %s14 = sphi 0, %s18
      %p15 = scmp.ge.s32.totalorder %s14, 4
      %s22 = sphi 0, %s22
      %s24 = sphi 0, %s22
      %s25 = sphi 0, %s24
      %s39 = sphi 0, %s25
      %s43 = sphi 0, %s43
      %s45 = sphi 0, %s43
      %s46 = sphi 0, %s45
      %s60 = sphi 0, %s46
      %s66 = sphi 0, %s68
      %s69 = sphi 0, %s66
      %s70 = sphi 0, %s69
      %s86 = sphi 0, %s70
      %s92 = sphi 0, %s94
      %s95 = sphi 0, %s92
      %s96 = sphi 0, %s95
      %s112 = sphi 0, %s96
    $region4: #{_gaussian_blur_nchw.1} parent=1 // loop_header_branch
      %17 = sbr.rel (%p15) target = $region8
    $region5: #{_gaussian_blur_nchw.1} parent=1 // loop_body
      %s19 = ssub.s32 %s14, 1
      %s20 = ssub.s32 %s14, 2
      %s21 = sadd.s32 %s14, 1
      %s23 = sadd.s32 %s22, 1
      %p26 = scmp.eq.s32.totalorder %s14, 1
      %p27 = scmp.ne.s32.totalorder %s22, %s24
      %p28 = scmp.eq.s32.totalorder %s14, 0
      %p29 = por %p27, %p28
      %p30 = scmp.ne.s32.totalorder %s22, %s24
      %p31 = scmp.eq.s32.totalorder %s19, 1
      %p32 = por %p30, %p31
      %p33 = scmp.ne.s32.totalorder %s24, %s25
      %p34 = scmp.eq.s32.totalorder %s19, 0
      %p35 = por %p33, %p34
      %p36 = scmp.ne.s32.totalorder %s24, %s25
      %p37 = scmp.eq.s32.totalorder %s20, 1
      %p38 = por %p36, %p37
      %p40 = scmp.ne.s32.totalorder %s25, %s39
      %p41 = scmp.eq.s32.totalorder %s20, 0
      %p42 = por %p40, %p41
      %s44 = sadd.s32 %s43, 1
      %p47 = scmp.eq.s32.totalorder %s14, 1
      %p48 = scmp.ne.s32.totalorder %s43, %s45
      %p49 = scmp.eq.s32.totalorder %s14, 0
      %p50 = por %p48, %p49
      %p51 = scmp.ne.s32.totalorder %s43, %s45
      %p52 = scmp.eq.s32.totalorder %s19, 1
      %p53 = por %p51, %p52
      %p54 = scmp.ne.s32.totalorder %s45, %s46
      %p55 = scmp.eq.s32.totalorder %s19, 0
      %p56 = por %p54, %p55
      %p57 = scmp.ne.s32.totalorder %s45, %s46
      %p58 = scmp.eq.s32.totalorder %s20, 1
      %p59 = por %p57, %p58
      %p61 = scmp.ne.s32.totalorder %s46, %s60
      %p62 = scmp.eq.s32.totalorder %s20, 0
      %p63 = por %p61, %p62
      %s64 = ssub.s32 %s14, %s21
      %p65 = scmp.eq.s32.totalorder %s64, 0
      %s67 = sadd.s32 %s66, 1
      %s68 = scalar_select %p65, %s66, %s67
      %p71 = pneg %p65
      %p72 = scmp.eq.s32.totalorder %s14, 1
      %p73 = por %p71, %p72
      %p74 = scmp.ne.s32.totalorder %s66, %s69
      %p75 = scmp.eq.s32.totalorder %s14, 0
      %p76 = por %p74, %p75
      %p77 = scmp.ne.s32.totalorder %s66, %s69
      %p78 = scmp.eq.s32.totalorder %s19, 1
      %p79 = por %p77, %p78
      %p80 = scmp.ne.s32.totalorder %s69, %s70
      %p81 = scmp.eq.s32.totalorder %s19, 0
      %p82 = por %p80, %p81
      %p83 = scmp.ne.s32.totalorder %s69, %s70
      %p84 = scmp.eq.s32.totalorder %s20, 1
      %p85 = por %p83, %p84
      %p87 = scmp.ne.s32.totalorder %s70, %s86
      %p88 = scmp.eq.s32.totalorder %s20, 0
      %p89 = por %p87, %p88
      %s90 = ssub.s32 %s14, %s21
      %p91 = scmp.eq.s32.totalorder %s90, 0
      %s93 = sadd.s32 %s92, 1
      %s94 = scalar_select %p91, %s92, %s93
      %p97 = pneg %p91
      %p98 = scmp.eq.s32.totalorder %s14, 1
      %p99 = por %p97, %p98
      %p100 = scmp.ne.s32.totalorder %s92, %s95
      %p101 = scmp.eq.s32.totalorder %s14, 0
      %p102 = por %p100, %p101
      %p103 = scmp.ne.s32.totalorder %s92, %s95
      %p104 = scmp.eq.s32.totalorder %s19, 1
      %p105 = por %p103, %p104
      %p106 = scmp.ne.s32.totalorder %s95, %s96
      %p107 = scmp.eq.s32.totalorder %s19, 0
      %p108 = por %p106, %p107
      %p109 = scmp.ne.s32.totalorder %s95, %s96
      %p110 = scmp.eq.s32.totalorder %s20, 1
      %p111 = por %p109, %p110
      %p113 = scmp.ne.s32.totalorder %s96, %s112
      %p114 = scmp.eq.s32.totalorder %s20, 0
      %p115 = por %p113, %p114
      %p116 = scmp.le.s32.totalorder 1, %s14
      %p117 = scmp.lt.s32.totalorder %s14, 3
      %p118 = pnand %p116, %p117
      %p119 = pneg %p118
      // Predicated region
      $region9: #{_gaussian_blur_nchw.1} parent=5 // pred_check
        _
      $region10: #{_gaussian_blur_nchw.1} parent=5 // pred_check_branch
        %121 = sbr.rel (%p118) target = $region12
      $region11: #{_gaussian_blur_nchw.1} parent=5 // pred_region
        %s122 = ssub.s32 %s14, 1
        // Predicated region
        $region13: #{_gaussian_blur_nchw.1} parent=11 // pred_check
          %p123 = pneg %p35
        $region14: #{_gaussian_blur_nchw.1} parent=11 // pred_check_branch
          %125 = sbr.rel (%p123) target = $region16
        $region15: #{_gaussian_blur_nchw.1} parent=11 // pred_region
          %s127 = ssub.s32 512, 512
          %128 = vsyncadd [#allocation3], %s127
          %s129 = sshll.u32 [#allocation2], 4
          %s130 = int_to_ptr.vmem [resolvable:$true] %s129
          %135 = dma.hbm_to_vmem [thread:$0]  %s0, 512, %s130, [#allocation3], 64, 64, 4
        $region16: #{_gaussian_blur_nchw.1} parent=11 // pred_fallthru
          _
        // Predicated region
        $region17: #{_gaussian_blur_nchw.1} parent=11 // pred_check
          %p136 = pneg %p56
        $region18: #{_gaussian_blur_nchw.1} parent=11 // pred_check_branch
          %138 = sbr.rel (%p136) target = $region20
        $region19: #{_gaussian_blur_nchw.1} parent=11 // pred_region
          %s140 = ssub.s32 512, 512
          %141 = vsyncadd [#allocation6], %s140
          %s142 = sshll.u32 [#allocation5], 4
          %s143 = int_to_ptr.vmem [resolvable:$true] %s142
          %148 = dma.hbm_to_vmem [thread:$0]  %s1, 512, %s143, [#allocation6], 64, 64, 4
        $region20: #{_gaussian_blur_nchw.1} parent=11 // pred_fallthru
          _
      $region12: #{_gaussian_blur_nchw.1} parent=5 // pred_fallthru
        _
      %p149 = scmp.lt.s32.totalorder %s14, 2
      // Predicated region
      $region21: #{_gaussian_blur_nchw.1} parent=5 // pred_check
        %p150 = pneg %p149
      $region22: #{_gaussian_blur_nchw.1} parent=5 // pred_check_branch
        %152 = sbr.rel (%p150) target = $region24
      $region23: #{_gaussian_blur_nchw.1} parent=5 // pred_region
        // Predicated region
        $region25: #{_gaussian_blur_nchw.1} parent=23 // pred_check
          %p153 = pneg %p76
        $region26: #{_gaussian_blur_nchw.1} parent=23 // pred_check_branch
          %155 = sbr.rel (%p153) target = $region28
        $region27: #{_gaussian_blur_nchw.1} parent=23 // pred_region
          %s156 = sand.u32 %s14, 1
          %s157 = scalar_lea.sflag [#allocation3], %s156
          %s158 = sand.u32 %s66, 1
          %s159 = smul.addr %s158, 192
          %s160 = scalar_lea.vmem [#allocation7], %s159
          %s161 = smul.u32 3, %s14
          %s163 = ssub.s32 3072, 3072
          %164 = vsyncadd %s157, %s163
          %s165 = smul.addr %s161, 8
          %s166 = smul.addr %s165, 128
          %s167 = scalar_lea.hbm %s2, %s166
          %s168 = sshll.u32 %s160, 4
          %s169 = int_to_ptr.vmem [resolvable:$true] %s168
          %174 = dma.hbm_to_vmem [thread:$0]  %s167, 3072, %s169, %s157, 128, 128, 8
        $region28: #{_gaussian_blur_nchw.1} parent=23 // pred_fallthru
          _
      $region24: #{_gaussian_blur_nchw.1} parent=5 // pred_fallthru
        _
      %p175 = scmp.le.s32.totalorder 1, %s14
      %p176 = scmp.lt.s32.totalorder %s14, 3
      %p177 = pnand %p175, %p176
      %p178 = pneg %p177
      // Predicated region
      $region29: #{_gaussian_blur_nchw.1} parent=5 // pred_check
        _
      $region30: #{_gaussian_blur_nchw.1} parent=5 // pred_check_branch
        %180 = sbr.rel (%p177) target = $region32
      $region31: #{_gaussian_blur_nchw.1} parent=5 // pred_region
        %s181 = ssub.s32 %s14, 1
        // Predicated region
        $region33: #{_gaussian_blur_nchw.1} parent=31 // pred_check
          %p182 = pneg %p35
        $region34: #{_gaussian_blur_nchw.1} parent=31 // pred_check_branch
          %184 = sbr.rel (%p182) target = $region36
        $region35: #{_gaussian_blur_nchw.1} parent=31 // pred_region
          %185 = dma.done [#allocation3], 512
        $region36: #{_gaussian_blur_nchw.1} parent=31 // pred_fallthru
          _
        // Predicated region
        $region37: #{_gaussian_blur_nchw.1} parent=31 // pred_check
          %p186 = pneg %p56
        $region38: #{_gaussian_blur_nchw.1} parent=31 // pred_check_branch
          %188 = sbr.rel (%p186) target = $region40
        $region39: #{_gaussian_blur_nchw.1} parent=31 // pred_region
          %189 = dma.done [#allocation6], 512
        $region40: #{_gaussian_blur_nchw.1} parent=31 // pred_fallthru
          _
        %s190 = sand.u32 %s19, 1
        %s191 = scalar_lea.sflag [#allocation3], %s190
        %s192 = sand.u32 %s69, 1
        %s193 = smul.addr %s192, 192
        %s194 = scalar_lea.vmem [#allocation7], %s193
        // Predicated region
        $region41: #{_gaussian_blur_nchw.1} parent=31 // pred_check
          %p195 = pneg %p82
        $region42: #{_gaussian_blur_nchw.1} parent=31 // pred_check_branch
          %197 = sbr.rel (%p195) target = $region44
        $region43: #{_gaussian_blur_nchw.1} parent=31 // pred_region
          %198 = dma.done %s191, 3072
        $region44: #{_gaussian_blur_nchw.1} parent=31 // pred_fallthru
          _
        %p199 = pneg %p35
        %p200 = pneg %p32
        %p201 = pneg %p56
        %p202 = pneg %p53
        %s203 = sand.u32 %s19, 1
        %s204 = scalar_lea.sflag [#allocation3], %s203
        %s205 = sand.u32 %s69, 1
        %s206 = smul.addr %s205, 192
        %s207 = scalar_lea.vmem [#allocation7], %s206
        %p208 = pneg %p82
        %p209 = pneg %p79
        %p210 = pneg %p108
        %p211 = pneg %p105
        %s212 = sand.u32 %s95, 1
        %s213 = scalar_lea.sflag [#allocation4], %s212
        %s214 = sand.u32 %s95, 1
        %s215 = smul.addr %s214, 192
        %s216 = scalar_lea.vmem [#allocation8], %s215
        %s217 = smul.u32 3, %s19
        %s218 = smul.u32 3, %s19
        %v220 = vld [vmem:[%s194] sm:$0xff]
        %v221 = vld [vmem:[%s194 + $0x8] sm:$0xff]
        %v222 = vld [vmem:[%s194 + $0x10] sm:$0xff]
        %v223 = vld [vmem:[%s194 + $0x18] sm:$0xff]
        %v224 = vld [vmem:[%s194 + $0x20] sm:$0xff]
        %v225 = vld [vmem:[%s194 + $0x28] sm:$0xff]
        %v226 = vld [vmem:[%s194 + $0x30] sm:$0xff]
        %v227 = vld [vmem:[%s194 + $0x38] sm:$0xff]
        %v228 = vld [vmem:[%s194 + $0x40] sm:$0xff]
        %v229 = vld [vmem:[%s194 + $0x48] sm:$0xff]
        %v230 = vld [vmem:[%s194 + $0x50] sm:$0xff]
        %v231 = vld [vmem:[%s194 + $0x58] sm:$0xff]
        %v232 = vld [vmem:[%s194 + $0x60] sm:$0xff]
        %v233 = vld [vmem:[%s194 + $0x68] sm:$0xff]
        %v234 = vld [vmem:[%s194 + $0x70] sm:$0xff]
        %v235 = vld [vmem:[%s194 + $0x78] sm:$0xff]
        %v236 = vld [vmem:[%s194 + $0x80] sm:$0xff]
        %v237 = vld [vmem:[%s194 + $0x88] sm:$0xff]
        %v238 = vld [vmem:[%s194 + $0x90] sm:$0xff]
        %v239 = vld [vmem:[%s194 + $0x98] sm:$0xff]
        %v240 = vld [vmem:[%s194 + $0xa0] sm:$0xff]
        %v241 = vld [vmem:[%s194 + $0xa8] sm:$0xff]
        %v242 = vld [vmem:[%s194 + $0xb0] sm:$0xff]
        %v243 = vld [vmem:[%s194 + $0xb8] sm:$0xff]
        %v244 = vpack.c.bf16 %v221, %v220
        %v245 = vpack.c.bf16 %v223, %v222
        %v246 = vpack.c.bf16 %v225, %v224
        %v247 = vpack.c.bf16 %v227, %v226
        %v248 = vpack.c.bf16 %v229, %v228
        %v249 = vpack.c.bf16 %v231, %v230
        %v250 = vpack.c.bf16 %v233, %v232
        %v251 = vpack.c.bf16 %v235, %v234
        %v252 = vpack.c.bf16 %v237, %v236
        %v253 = vpack.c.bf16 %v239, %v238
        %v254 = vpack.c.bf16 %v241, %v240
        %v255 = vpack.c.bf16 %v243, %v242
        %v256 = vld [vmem:[#allocation5] sm:$0xf]
        %v257 = vld [vmem:[#allocation5 + $0x4] sm:$0xf]
        %v258 = vld [vmem:[#allocation5 + $0x8] sm:$0xf]
        %v259 = vld [vmem:[#allocation5 + $0xc] sm:$0xf]
        %v260 = vld [vmem:[#allocation5 + $0x10] sm:$0xf]
        %v261 = vld [vmem:[#allocation5 + $0x14] sm:$0xf]
        %v262 = vld [vmem:[#allocation5 + $0x18] sm:$0xf]
        %v263 = vld [vmem:[#allocation5 + $0x1c] sm:$0xf]
        %v272 = vunpack.c.l.b16 %v256
        %v273 = vunpack.c.l.b16 %v257
        %v274 = vunpack.c.l.b16 %v258
        %v275 = vunpack.c.l.b16 %v259
        %v276 = vunpack.c.l.b16 %v260
        %v277 = vunpack.c.l.b16 %v261
        %v278 = vunpack.c.l.b16 %v262
        %v279 = vunpack.c.l.b16 %v263
        %v280 = vpack.c.b16 %v273, %v272
        %v281 = vpack.c.b16 %v275, %v274
        %v282 = vpack.c.b16 %v277, %v276
        %v283 = vpack.c.b16 %v279, %v278
        %vm288 = vcmask 523264
        %v290 = vsel %vm288, %v244, 0
        %v293 = vsel %vm288, %v245, 0
        %v296 = vsel %vm288, %v246, 0
        %v299 = vsel %vm288, %v247, 0
        %v302 = vsel %vm288, %v248, 0
        %v305 = vsel %vm288, %v249, 0
        %v308 = vsel %vm288, %v250, 0
        %v311 = vsel %vm288, %v251, 0
        %v314 = vsel %vm288, %v252, 0
        %v317 = vsel %vm288, %v253, 0
        %v320 = vsel %vm288, %v254, 0
        %v323 = vsel %vm288, %v255, 0
        %325 = vmatprep.subr.bf16.mxu0 0
        %326 = vmatpush1.bf16.msra.mxu0 %v280
        %327 = vmatprep.subr.bf16.mxu0 0
        %328 = vmatpush1.bf16.msra.mxu0 %v281
        %329 = vmatprep.subr.bf16.mxu0 0
        %330 = vmatpush1.bf16.msra.mxu0 %v282
        %331 = vmatprep.subr.bf16.mxu0 0
        %332 = vmatpush1.bf16.msra.mxu0 %v283
        %333 = vmatprep.subr.bf16.mxu0 0
        %334 = vmatpush1.bf16.msra.mxu0 0
        %335 = vmatprep.subr.bf16.mxu0 0
        %336 = vmatpush1.bf16.msra.mxu0 0
        %337 = vmatprep.subr.bf16.mxu0 0
        %338 = vmatpush1.bf16.msra.mxu0 0
        %339 = vmatprep.subr.bf16.mxu0 0
        %340 = vmatpush1.bf16.msra.mxu0 0
        %341 = vmatprep.subr.bf16.mxu0 0
        %342 = vmatpush1.bf16.msra.mxu0 0
        %343 = vmatprep.subr.bf16.mxu0 0
        %344 = vmatpush1.bf16.msra.mxu0 0
        %345 = vmatprep.subr.bf16.mxu0 0
        %346 = vmatpush1.bf16.msra.mxu0 0
        %347 = vmatprep.subr.bf16.mxu0 0
        %348 = vmatpush1.bf16.msra.mxu0 0
        %349 = vmatprep.subr.bf16.mxu0 0
        %350 = vmatpush1.bf16.msra.mxu0 0
        %351 = vmatprep.subr.bf16.mxu0 0
        %352 = vmatpush1.bf16.msra.mxu0 0
        %353 = vmatprep.subr.bf16.mxu0 0
        %354 = vmatpush1.bf16.msra.mxu0 0
        %355 = vmatprep.subr.bf16.mxu0 0
        %356 = vmatpush1.bf16.msra.mxu0 0
        %357 = vmatprep.mubr.bf16.mxu0 0
        %358 = vmatmul.mubr.bf16.gmra.mrb[0].mxu0 %v290
        %v359 = vpop.f32.mrb[0].mxu0
        %v360 = vadd.f32 0.0, %v359
        %v361 = vpop.f32.mrb[0].mxu0
        %v362 = vpop.f32.mrb[0].mxu0
        %v363 = vadd.f32 0.0, %v362
        %v364 = vpop.f32.mrb[0].mxu0
        %365 = vmatprep.mubr.bf16.mxu0 0
        %366 = vmatmul.mubr.bf16.gmra.mrb[0].mxu0 %v293
        %v367 = vpop.f32.mrb[0].mxu0
        %v368 = vadd.f32 0.0, %v367
        %v369 = vpop.f32.mrb[0].mxu0
        %v370 = vpop.f32.mrb[0].mxu0
        %v371 = vadd.f32 0.0, %v370
        %v372 = vpop.f32.mrb[0].mxu0
        %373 = vmatprep.mubr.bf16.mxu0 0
        %374 = vmatmul.mubr.bf16.gmra.mrb[0].mxu0 %v296
        %v375 = vpop.f32.mrb[0].mxu0
        %v376 = vadd.f32 0.0, %v375
        %v377 = vpop.f32.mrb[0].mxu0
        %v378 = vpop.f32.mrb[0].mxu0
        %v379 = vadd.f32 0.0, %v378
        %v380 = vpop.f32.mrb[0].mxu0
        %381 = vmatprep.mubr.bf16.mxu0 0
        %382 = vmatmul.mubr.bf16.gmra.mrb[0].mxu0 %v299
        %v383 = vpop.f32.mrb[0].mxu0
        %v384 = vadd.f32 0.0, %v383
        %v385 = vpop.f32.mrb[0].mxu0
        %v386 = vpop.f32.mrb[0].mxu0
        %v387 = vadd.f32 0.0, %v386
        %v388 = vpop.f32.mrb[0].mxu0
        %389 = vmatprep.mubr.bf16.mxu0 0
        %390 = vmatmul.mubr.bf16.gmra.mrb[0].mxu0 %v302
        %v391 = vpop.f32.mrb[0].mxu0
        %v392 = vadd.f32 0.0, %v391
        %v393 = vpop.f32.mrb[0].mxu0
        %v394 = vpop.f32.mrb[0].mxu0
        %v395 = vadd.f32 0.0, %v394
        %v396 = vpop.f32.mrb[0].mxu0
        %397 = vmatprep.mubr.bf16.mxu0 0
        %398 = vmatmul.mubr.bf16.gmra.mrb[0].mxu0 %v305
        %v399 = vpop.f32.mrb[0].mxu0
        %v400 = vadd.f32 0.0, %v399
        %v401 = vpop.f32.mrb[0].mxu0
        %v402 = vpop.f32.mrb[0].mxu0
        %v403 = vadd.f32 0.0, %v402
        %v404 = vpop.f32.mrb[0].mxu0
        %405 = vmatprep.mubr.bf16.mxu0 0
        %406 = vmatmul.mubr.bf16.gmra.mrb[0].mxu0 %v308
        %v407 = vpop.f32.mrb[0].mxu0
        %v408 = vadd.f32 0.0, %v407
        %v409 = vpop.f32.mrb[0].mxu0
        %v410 = vpop.f32.mrb[0].mxu0
        %v411 = vadd.f32 0.0, %v410
        %v412 = vpop.f32.mrb[0].mxu0
        %413 = vmatprep.mubr.bf16.mxu0 0
        %414 = vmatmul.mubr.bf16.gmra.mrb[0].mxu0 %v311
        %v415 = vpop.f32.mrb[0].mxu0
        %v416 = vadd.f32 0.0, %v415
        %v417 = vpop.f32.mrb[0].mxu0
        %v418 = vpop.f32.mrb[0].mxu0
        %v419 = vadd.f32 0.0, %v418
        %v420 = vpop.f32.mrb[0].mxu0
        %421 = vmatprep.mubr.bf16.mxu0 0
        %422 = vmatmul.mubr.bf16.gmra.mrb[0].mxu0 %v314
        %v423 = vpop.f32.mrb[0].mxu0
        %v424 = vadd.f32 0.0, %v423
        %v425 = vpop.f32.mrb[0].mxu0
        %v426 = vpop.f32.mrb[0].mxu0
        %v427 = vadd.f32 0.0, %v426
        %v428 = vpop.f32.mrb[0].mxu0
        %429 = vmatprep.mubr.bf16.mxu0 0
        %430 = vmatmul.mubr.bf16.gmra.mrb[0].mxu0 %v317
        %v431 = vpop.f32.mrb[0].mxu0
        %v432 = vadd.f32 0.0, %v431
        %v433 = vpop.f32.mrb[0].mxu0
        %v434 = vpop.f32.mrb[0].mxu0
        %v435 = vadd.f32 0.0, %v434
        %v436 = vpop.f32.mrb[0].mxu0
        %437 = vmatprep.mubr.bf16.mxu0 0
        %438 = vmatmul.mubr.bf16.gmra.mrb[0].mxu0 %v320
        %v439 = vpop.f32.mrb[0].mxu0
        %v440 = vadd.f32 0.0, %v439
        %v441 = vpop.f32.mrb[0].mxu0
        %v442 = vpop.f32.mrb[0].mxu0
        %v443 = vadd.f32 0.0, %v442
        %v444 = vpop.f32.mrb[0].mxu0
        %445 = vmatprep.mubr.bf16.mxu0 0
        %446 = vmatmul.mubr.bf16.gmra.mrb[0].mxu0 %v323
        %v447 = vpop.f32.mrb[0].mxu0
        %v448 = vadd.f32 0.0, %v447
        %v449 = vpop.f32.mrb[0].mxu0
        %v450 = vpop.f32.mrb[0].mxu0
        %v451 = vadd.f32 0.0, %v450
        %v452 = vpop.f32.mrb[0].mxu0
        %453 = vdwg.mxu0
        %v454 = vpack.c.bf16 %v363, %v360
        %v455 = vpack.c.bf16 %v371, %v368
        %v456 = vpack.c.bf16 %v379, %v376
        %v457 = vpack.c.bf16 %v387, %v384
        %v458 = vpack.c.bf16 %v395, %v392
        %v459 = vpack.c.bf16 %v403, %v400
        %v460 = vpack.c.bf16 %v411, %v408
        %v461 = vpack.c.bf16 %v419, %v416
        %v462 = vpack.c.bf16 %v427, %v424
        %v463 = vpack.c.bf16 %v435, %v432
        %v464 = vpack.c.bf16 %v443, %v440
        %v465 = vpack.c.bf16 %v451, %v448
        %v466 = vld [vmem:[#allocation2] sm:$0xf]
        %v467 = vld [vmem:[#allocation2 + $0x4] sm:$0xf]
        %v468 = vld [vmem:[#allocation2 + $0x8] sm:$0xf]
        %v469 = vld [vmem:[#allocation2 + $0xc] sm:$0xf]
        %v470 = vld [vmem:[#allocation2 + $0x10] sm:$0xf]
        %v471 = vld [vmem:[#allocation2 + $0x14] sm:$0xf]
        %v472 = vld [vmem:[#allocation2 + $0x18] sm:$0xf]
        %v473 = vld [vmem:[#allocation2 + $0x1c] sm:$0xf]
        %v482 = vunpack.c.l.b16 %v466
        %v483 = vunpack.c.l.b16 %v467
        %v484 = vunpack.c.l.b16 %v468
        %v485 = vunpack.c.l.b16 %v469
        %v486 = vunpack.c.l.b16 %v470
        %v487 = vunpack.c.l.b16 %v471
        %v488 = vunpack.c.l.b16 %v472
        %v489 = vunpack.c.l.b16 %v473
        %v490 = vpack.c.b16 %v483, %v482
        %v491 = vpack.c.b16 %v485, %v484
        %v492 = vpack.c.b16 %v487, %v486
        %v493 = vpack.c.b16 %v489, %v488
        %v495 = vsel %vm288, %v490, 0
        %v498 = vsel %vm288, %v491, 0
        %v501 = vsel %vm288, %v492, 0
        %v504 = vsel %vm288, %v493, 0
        %506 = vmatprep.subr.bf16.mxu0 0
        %507 = vmatpush1.bf16.msra.mxu0 %v454
        %508 = vmatprep.subr.bf16.mxu0 0
        %509 = vmatpush1.bf16.msra.mxu0 %v455
        %510 = vmatprep.subr.bf16.mxu0 0
        %511 = vmatpush1.bf16.msra.mxu0 %v456
        %512 = vmatprep.subr.bf16.mxu0 0
        %513 = vmatpush1.bf16.msra.mxu0 %v457
        %514 = vmatprep.subr.bf16.mxu0 0
        %515 = vmatpush1.bf16.msra.mxu0 0
        %516 = vmatprep.subr.bf16.mxu0 0
        %517 = vmatpush1.bf16.msra.mxu0 0
        %518 = vmatprep.subr.bf16.mxu0 0
        %519 = vmatpush1.bf16.msra.mxu0 0
        %520 = vmatprep.subr.bf16.mxu0 0
        %521 = vmatpush1.bf16.msra.mxu0 0
        %522 = vmatprep.subr.bf16.mxu0 0
        %523 = vmatpush1.bf16.msra.mxu0 0
        %524 = vmatprep.subr.bf16.mxu0 0
        %525 = vmatpush1.bf16.msra.mxu0 0
        %526 = vmatprep.subr.bf16.mxu0 0
        %527 = vmatpush1.bf16.msra.mxu0 0
        %528 = vmatprep.subr.bf16.mxu0 0
        %529 = vmatpush1.bf16.msra.mxu0 0
        %530 = vmatprep.subr.bf16.mxu0 0
        %531 = vmatpush1.bf16.msra.mxu0 0
        %532 = vmatprep.subr.bf16.mxu0 0
        %533 = vmatpush1.bf16.msra.mxu0 0
        %534 = vmatprep.subr.bf16.mxu0 0
        %535 = vmatpush1.bf16.msra.mxu0 0
        %536 = vmatprep.subr.bf16.mxu0 0
        %537 = vmatpush1.bf16.msra.mxu0 0
        %538 = vmatprep.mubr.bf16.mxu0 0
        %539 = vmatmul.mubr.bf16.gmra.mrb[0].mxu0 %v495
        %v540 = vpop.f32.mrb[0].mxu0
        %v541 = vadd.f32 0.0, %v540
        %v542 = vpop.f32.mrb[0].mxu0
        %v543 = vpop.f32.mrb[0].mxu0
        %v544 = vadd.f32 0.0, %v543
        %v545 = vpop.f32.mrb[0].mxu0
        %546 = vmatprep.mubr.bf16.mxu0 0
        %547 = vmatmul.mubr.bf16.gmra.mrb[0].mxu0 %v498
        %v548 = vpop.f32.mrb[0].mxu0
        %v549 = vadd.f32 0.0, %v548
        %v550 = vpop.f32.mrb[0].mxu0
        %v551 = vpop.f32.mrb[0].mxu0
        %v552 = vadd.f32 0.0, %v551
        %v553 = vpop.f32.mrb[0].mxu0
        %554 = vmatprep.mubr.bf16.mxu0 0
        %555 = vmatmul.mubr.bf16.gmra.mrb[0].mxu0 %v501
        %v556 = vpop.f32.mrb[0].mxu0
        %v557 = vadd.f32 0.0, %v556
        %v558 = vpop.f32.mrb[0].mxu0
        %v559 = vpop.f32.mrb[0].mxu0
        %v560 = vadd.f32 0.0, %v559
        %v561 = vpop.f32.mrb[0].mxu0
        %562 = vmatprep.mubr.bf16.mxu0 0
        %563 = vmatmul.mubr.bf16.gmra.mrb[0].mxu0 %v504
        %v564 = vpop.f32.mrb[0].mxu0
        %v565 = vadd.f32 0.0, %v564
        %v566 = vpop.f32.mrb[0].mxu0
        %v567 = vpop.f32.mrb[0].mxu0
        %v568 = vadd.f32 0.0, %v567
        %v569 = vpop.f32.mrb[0].mxu0
        %570 = vdwg.mxu0
        %571 = vst.msk [vmem:[%s216] sm:$0xff] %vm288, %v541
        %572 = vst.msk [vmem:[%s216 + $0x8] sm:$0xff] %vm288, %v544
        %573 = vst.msk [vmem:[%s216 + $0x10] sm:$0xff] %vm288, %v549
        %574 = vst.msk [vmem:[%s216 + $0x18] sm:$0xff] %vm288, %v552
        %575 = vst.msk [vmem:[%s216 + $0x20] sm:$0xff] %vm288, %v557
        %576 = vst.msk [vmem:[%s216 + $0x28] sm:$0xff] %vm288, %v560
        %577 = vst.msk [vmem:[%s216 + $0x30] sm:$0xff] %vm288, %v565
        %578 = vst.msk [vmem:[%s216 + $0x38] sm:$0xff] %vm288, %v568
        %579 = vmatprep.subr.bf16.mxu0 0
        %580 = vmatpush1.bf16.msra.mxu0 %v458
        %581 = vmatprep.subr.bf16.mxu0 0
        %582 = vmatpush1.bf16.msra.mxu0 %v459
        %583 = vmatprep.subr.bf16.mxu0 0
        %584 = vmatpush1.bf16.msra.mxu0 %v460
        %585 = vmatprep.subr.bf16.mxu0 0
        %586 = vmatpush1.bf16.msra.mxu0 %v461
        %587 = vmatprep.subr.bf16.mxu0 0
        %588 = vmatpush1.bf16.msra.mxu0 0
        %589 = vmatprep.subr.bf16.mxu0 0
        %590 = vmatpush1.bf16.msra.mxu0 0
        %591 = vmatprep.subr.bf16.mxu0 0
        %592 = vmatpush1.bf16.msra.mxu0 0
        %593 = vmatprep.subr.bf16.mxu0 0
        %594 = vmatpush1.bf16.msra.mxu0 0
        %595 = vmatprep.subr.bf16.mxu0 0
        %596 = vmatpush1.bf16.msra.mxu0 0
        %597 = vmatprep.subr.bf16.mxu0 0
        %598 = vmatpush1.bf16.msra.mxu0 0
        %599 = vmatprep.subr.bf16.mxu0 0
        %600 = vmatpush1.bf16.msra.mxu0 0
        %601 = vmatprep.subr.bf16.mxu0 0
        %602 = vmatpush1.bf16.msra.mxu0 0
        %603 = vmatprep.subr.bf16.mxu0 0
        %604 = vmatpush1.bf16.msra.mxu0 0
        %605 = vmatprep.subr.bf16.mxu0 0
        %606 = vmatpush1.bf16.msra.mxu0 0
        %607 = vmatprep.subr.bf16.mxu0 0
        %608 = vmatpush1.bf16.msra.mxu0 0
        %609 = vmatprep.subr.bf16.mxu0 0
        %610 = vmatpush1.bf16.msra.mxu0 0
        %611 = vmatprep.mubr.bf16.mxu0 0
        %612 = vmatmul.mubr.bf16.gmra.mrb[0].mxu0 %v495
        %v613 = vpop.f32.mrb[0].mxu0
        %v614 = vadd.f32 0.0, %v613
        %v615 = vpop.f32.mrb[0].mxu0
        %v616 = vpop.f32.mrb[0].mxu0
        %v617 = vadd.f32 0.0, %v616
        %v618 = vpop.f32.mrb[0].mxu0
        %619 = vmatprep.mubr.bf16.mxu0 0
        %620 = vmatmul.mubr.bf16.gmra.mrb[0].mxu0 %v498
        %v621 = vpop.f32.mrb[0].mxu0
        %v622 = vadd.f32 0.0, %v621
        %v623 = vpop.f32.mrb[0].mxu0
        %v624 = vpop.f32.mrb[0].mxu0
        %v625 = vadd.f32 0.0, %v624
        %v626 = vpop.f32.mrb[0].mxu0
        %627 = vmatprep.mubr.bf16.mxu0 0
        %628 = vmatmul.mubr.bf16.gmra.mrb[0].mxu0 %v501
        %v629 = vpop.f32.mrb[0].mxu0
        %v630 = vadd.f32 0.0, %v629
        %v631 = vpop.f32.mrb[0].mxu0
        %v632 = vpop.f32.mrb[0].mxu0
        %v633 = vadd.f32 0.0, %v632
        %v634 = vpop.f32.mrb[0].mxu0
        %635 = vmatprep.mubr.bf16.mxu0 0
        %636 = vmatmul.mubr.bf16.gmra.mrb[0].mxu0 %v504
        %v637 = vpop.f32.mrb[0].mxu0
        %v638 = vadd.f32 0.0, %v637
        %v639 = vpop.f32.mrb[0].mxu0
        %v640 = vpop.f32.mrb[0].mxu0
        %v641 = vadd.f32 0.0, %v640
        %v642 = vpop.f32.mrb[0].mxu0
        %643 = vdwg.mxu0
        %s644 = scalar_lea.vmem %s216, 64 [#allocation8]
        %645 = vst.msk [vmem:[%s644] sm:$0xff] %vm288, %v614
        %646 = vst.msk [vmem:[%s644 + $0x8] sm:$0xff] %vm288, %v617
        %647 = vst.msk [vmem:[%s644 + $0x10] sm:$0xff] %vm288, %v622
        %648 = vst.msk [vmem:[%s644 + $0x18] sm:$0xff] %vm288, %v625
        %649 = vst.msk [vmem:[%s644 + $0x20] sm:$0xff] %vm288, %v630
        %650 = vst.msk [vmem:[%s644 + $0x28] sm:$0xff] %vm288, %v633
        %651 = vst.msk [vmem:[%s644 + $0x30] sm:$0xff] %vm288, %v638
        %652 = vst.msk [vmem:[%s644 + $0x38] sm:$0xff] %vm288, %v641
        %653 = vmatprep.subr.bf16.mxu0 0
        %654 = vmatpush1.bf16.msra.mxu0 %v462
        %655 = vmatprep.subr.bf16.mxu0 0
        %656 = vmatpush1.bf16.msra.mxu0 %v463
        %657 = vmatprep.subr.bf16.mxu0 0
        %658 = vmatpush1.bf16.msra.mxu0 %v464
        %659 = vmatprep.subr.bf16.mxu0 0
        %660 = vmatpush1.bf16.msra.mxu0 %v465
        %661 = vmatprep.subr.bf16.mxu0 0
        %662 = vmatpush1.bf16.msra.mxu0 0
        %663 = vmatprep.subr.bf16.mxu0 0
        %664 = vmatpush1.bf16.msra.mxu0 0
        %665 = vmatprep.subr.bf16.mxu0 0
        %666 = vmatpush1.bf16.msra.mxu0 0
        %667 = vmatprep.subr.bf16.mxu0 0
        %668 = vmatpush1.bf16.msra.mxu0 0
        %669 = vmatprep.subr.bf16.mxu0 0
        %670 = vmatpush1.bf16.msra.mxu0 0
        %671 = vmatprep.subr.bf16.mxu0 0
        %672 = vmatpush1.bf16.msra.mxu0 0
        %673 = vmatprep.subr.bf16.mxu0 0
        %674 = vmatpush1.bf16.msra.mxu0 0
        %675 = vmatprep.subr.bf16.mxu0 0
        %676 = vmatpush1.bf16.msra.mxu0 0
        %677 = vmatprep.subr.bf16.mxu0 0
        %678 = vmatpush1.bf16.msra.mxu0 0
        %679 = vmatprep.subr.bf16.mxu0 0
        %680 = vmatpush1.bf16.msra.mxu0 0
        %681 = vmatprep.subr.bf16.mxu0 0
        %682 = vmatpush1.bf16.msra.mxu0 0
        %683 = vmatprep.subr.bf16.mxu0 0
        %684 = vmatpush1.bf16.msra.mxu0 0
        %685 = vmatprep.mubr.bf16.mxu0 0
        %686 = vmatmul.mubr.bf16.gmra.mrb[0].mxu0 %v495
        %v687 = vpop.f32.mrb[0].mxu0
        %v688 = vadd.f32 0.0, %v687
        %v689 = vpop.f32.mrb[0].mxu0
        %v690 = vpop.f32.mrb[0].mxu0
        %v691 = vadd.f32 0.0, %v690
        %v692 = vpop.f32.mrb[0].mxu0
        %693 = vmatprep.mubr.bf16.mxu0 0
        %694 = vmatmul.mubr.bf16.gmra.mrb[0].mxu0 %v498
        %v695 = vpop.f32.mrb[0].mxu0
        %v696 = vadd.f32 0.0, %v695
        %v697 = vpop.f32.mrb[0].mxu0
        %v698 = vpop.f32.mrb[0].mxu0
        %v699 = vadd.f32 0.0, %v698
        %v700 = vpop.f32.mrb[0].mxu0
        %701 = vmatprep.mubr.bf16.mxu0 0
        %702 = vmatmul.mubr.bf16.gmra.mrb[0].mxu0 %v501
        %v703 = vpop.f32.mrb[0].mxu0
        %v704 = vadd.f32 0.0, %v703
        %v705 = vpop.f32.mrb[0].mxu0
        %v706 = vpop.f32.mrb[0].mxu0
        %v707 = vadd.f32 0.0, %v706
        %v708 = vpop.f32.mrb[0].mxu0
        %709 = vmatprep.mubr.bf16.mxu0 0
        %710 = vmatmul.mubr.bf16.gmra.mrb[0].mxu0 %v504
        %v711 = vpop.f32.mrb[0].mxu0
        %v712 = vadd.f32 0.0, %v711
        %v713 = vpop.f32.mrb[0].mxu0
        %v714 = vpop.f32.mrb[0].mxu0
        %v715 = vadd.f32 0.0, %v714
        %v716 = vpop.f32.mrb[0].mxu0
        %717 = vdwg.mxu0
        %s718 = scalar_lea.vmem %s216, 128 [#allocation8]
        %719 = vst.msk [vmem:[%s718] sm:$0xff] %vm288, %v688
        %720 = vst.msk [vmem:[%s718 + $0x8] sm:$0xff] %vm288, %v691
        %721 = vst.msk [vmem:[%s718 + $0x10] sm:$0xff] %vm288, %v696
        %722 = vst.msk [vmem:[%s718 + $0x18] sm:$0xff] %vm288, %v699
        %723 = vst.msk [vmem:[%s718 + $0x20] sm:$0xff] %vm288, %v704
        %724 = vst.msk [vmem:[%s718 + $0x28] sm:$0xff] %vm288, %v707
        %725 = vst.msk [vmem:[%s718 + $0x30] sm:$0xff] %vm288, %v712
        %726 = vst.msk [vmem:[%s718 + $0x38] sm:$0xff] %vm288, %v715
        %s727 = sand.u32 %s95, 1
        %s728 = scalar_lea.sflag [#allocation4], %s727
        %s729 = sand.u32 %s95, 1
        %s730 = smul.addr %s729, 192
        %s731 = scalar_lea.vmem [#allocation8], %s730
        // Predicated region
        $region45: #{_gaussian_blur_nchw.1} parent=31 // pred_check
          %p732 = pneg %p105
        $region46: #{_gaussian_blur_nchw.1} parent=31 // pred_check_branch
          %734 = sbr.rel (%p732) target = $region48
        $region47: #{_gaussian_blur_nchw.1} parent=31 // pred_region
          %s735 = smul.u32 3, %s19
          %s737 = ssub.s32 3072, 3072
          %738 = vsyncadd %s728, %s737
          %s739 = smul.addr %s735, 8
          %s740 = smul.addr %s739, 128
          %s741 = scalar_lea.hbm %s3, %s740
          %s742 = sshll.u32 %s731, 4
          %s743 = int_to_ptr.vmem [resolvable:$true] %s742
          %748 = dma.vmem_to_hbm [thread:$0]  %s743, 3072, %s741, %s728, 128, 128, 8
        $region48: #{_gaussian_blur_nchw.1} parent=31 // pred_fallthru
          _
      $region32: #{_gaussian_blur_nchw.1} parent=5 // pred_fallthru
        _
      %p749 = scmp.le.s32.totalorder 2, %s14
      // Predicated region
      $region49: #{_gaussian_blur_nchw.1} parent=5 // pred_check
        %p750 = pneg %p749
      $region50: #{_gaussian_blur_nchw.1} parent=5 // pred_check_branch
        %752 = sbr.rel (%p750) target = $region52
      $region51: #{_gaussian_blur_nchw.1} parent=5 // pred_region
        %s753 = ssub.s32 %s14, 2
        // Predicated region
        $region53: #{_gaussian_blur_nchw.1} parent=51 // pred_check
          %p754 = pneg %p111
        $region54: #{_gaussian_blur_nchw.1} parent=51 // pred_check_branch
          %756 = sbr.rel (%p754) target = $region56
        $region55: #{_gaussian_blur_nchw.1} parent=51 // pred_region
          %s757 = sand.u32 %s96, 1
          %s758 = scalar_lea.sflag [#allocation4], %s757
          %s759 = sand.u32 %s96, 1
          %s760 = smul.addr %s759, 192
          %s761 = scalar_lea.vmem [#allocation8], %s760
          %762 = dma.done %s758, 3072
        $region56: #{_gaussian_blur_nchw.1} parent=51 // pred_fallthru
          _
      $region52: #{_gaussian_blur_nchw.1} parent=5 // pred_fallthru
        _
    $region6: #{_gaussian_blur_nchw.1} parent=1 // loop_footer
      %s18 = sadd.s32 1, %s14
    $region7: #{_gaussian_blur_nchw.1} parent=1 // loop_footer_branch
      %13 = sbr.rel target = $region3
    $region8: #{_gaussian_blur_nchw.1} parent=1 // loop_exit
      _
    %763 = vsyncpa [#allocation3], 1
    %s764 = scalar_lea.sflag [#allocation3], 1
    %765 = vsyncpa %s764, 1
    %766 = vsyncpa [#allocation6], 1
    %767 = vsyncpa [#allocation4], 1
    %s768 = scalar_lea.sflag [#allocation4], 1
    %769 = vsyncpa %s768, 1

</llo_original>
